<compile_context>
chip_gen: v6e
topology: v6e:2x2x1
jax: 0.10.0
libtpu: 0.0.40
codegen_flags: <defaults>
</compile_context>

<pallas_src>
import functools
import math

import jax
import jax.numpy as jnp
from jax.experimental import pallas as pl
from jax.experimental.pallas import tpu as pltpu

# Byte-based DMA planning thresholds (per the perf review: per-descriptor /
# per-semaphore overhead is fixed, so splitting only pays off for large copies).
_SPLIT_THRESHOLD_BYTES = 8 << 20     # don't split copies smaller than ~8 MiB
_MIN_CHUNK_BYTES = 2 << 20           # each chunk >= ~2 MiB when splitting
_MAX_PARALLEL_DMAS = 4               # cap on concurrent descriptors
_CROSS_CORE_SHARD_BYTES = 32 << 20   # shard rows over 2 programs (v7x TCs) above this
_DMA_ALIGN_BYTES = 512               # (marginal) byte alignment of chunk starts


def _make_chunks(seq_len: int, row_bytes: int) -> tuple[tuple[int, int], ...]:
    """Static (row_start, n_rows) chunks covering rows [0, seq_len)."""
    total_bytes = seq_len * row_bytes
    if total_bytes <= _SPLIT_THRESHOLD_BYTES:
        return ((0, seq_len),)
    n = max(1, min(_MAX_PARALLEL_DMAS, total_bytes // _MIN_CHUNK_BYTES))
    rows_per = -(-seq_len // n)  # ceil division
    # HBM->HBM DMAs are byte-addressed; the (8,128) tile constraint only applies
    # to VMEM/vreg layouts.  Align chunk start *byte offsets* to >= 512 B only.
    align_rows = _DMA_ALIGN_BYTES // math.gcd(row_bytes, _DMA_ALIGN_BYTES)
    rows_per = -(-rows_per // align_rows) * align_rows
    chunks = []
    r0 = 0
    while r0 < seq_len:
        nr = min(rows_per, seq_len - r0)
        chunks.append((r0, nr))
        r0 += nr
    return tuple(chunks)


def _partition(chunks, num_shards):
    """Assign a global semaphore index to each chunk and split across programs."""
    indexed = tuple((r0, nr, i) for i, (r0, nr) in enumerate(chunks))
    if num_shards == 1:
        return (indexed,)
    per = -(-len(indexed) // num_shards)
    groups = tuple(indexed[p * per:(p + 1) * per] for p in range(num_shards))
    return tuple(g for g in groups if g)


def _copy_prefix_kernel(per_program_chunks, w_hbm, o_hbm, sems):
    # w_hbm: (max_len, embed_dim) embedding table, left in HBM (pl.ANY).
    # o_hbm: (seq_len, embed_dim) output, left in HBM (pl.ANY).
    # sems:  one DMA semaphore per chunk (globally indexed).
    def issue_and_wait(chunks):
        copies = [
            pltpu.make_async_copy(
                w_hbm.at[pl.ds(r0, nr), :],
                o_hbm.at[pl.ds(r0, nr), :],
                sems.at[sem_idx],
            )
            for (r0, nr, sem_idx) in chunks
        ]
        for cp in copies:   # issue all DMAs back-to-back ...
            cp.start()
        for cp in copies:   # ... then wait for all of them.
            cp.wait()

    if len(per_program_chunks) == 1:
        # No grid (or a single program): issue directly.
        issue_and_wait(per_program_chunks[0])
    else:
        # grid=(P,) "parallel": each program copies its own row range.  On v7x
        # the programs land on different TensorCores; on single-TC chips this
        # is two cheap sequential iterations of a copy that is large anyway.
        for p, chunks in enumerate(per_program_chunks):
            @pl.when(pl.program_id(0) == p)
            def _(chunks=chunks):
                issue_and_wait(chunks)


# TODO(synk): seq_len stays a static arg (the DMA plan is static), so distinct
# lengths recompile; serving-style callers should bucket/pad seq_len.
@functools.partial(jax.jit, static_argnums=(1,))
def learned_positional_embeddings(weight: jax.Array, seq_len: int) -> jax.Array:
    """Returns weight[:seq_len] == embedding(arange(seq_len)) via a Pallas DMA kernel."""
    max_len, embed_dim = weight.shape
    if not (0 < seq_len <= max_len):
        raise ValueError(f"seq_len={seq_len} must be in (0, {max_len}]")

    # Full-context fast path: no kernel, no copy.
    if seq_len == max_len:
        return weight

    row_bytes = embed_dim * jnp.dtype(weight.dtype).itemsize
    total_bytes = seq_len * row_bytes
    chunks = _make_chunks(seq_len, row_bytes)
    num_shards = 2 if (total_bytes >= _CROSS_CORE_SHARD_BYTES and len(chunks) > 1) else 1
    per_program_chunks = _partition(chunks, num_shards)

    call_kwargs = {}
    if num_shards > 1:
        call_kwargs["grid"] = (num_shards,)
        call_kwargs["compiler_params"] = pltpu.CompilerParams(
            dimension_semantics=("parallel",))

    return pl.pallas_call(
        functools.partial(_copy_prefix_kernel, per_program_chunks),
        out_shape=jax.ShapeDtypeStruct((seq_len, embed_dim), weight.dtype),
        in_specs=[pl.BlockSpec(memory_space=pl.ANY)],    # keep the table in HBM
        out_specs=pl.BlockSpec(memory_space=pl.ANY),     # write the output in HBM
        scratch_shapes=[pltpu.SemaphoreType.DMA((len(chunks),))],
        cost_estimate=pl.CostEstimate(                   # pure memory op hint for XLA
            flops=0, transcendentals=0, bytes_accessed=2 * total_bytes),
        **call_kwargs,
    )(weight)


if __name__ == "__main__":
    # Module hyper-params (small, consistent with the module's __init__).
    max_len, embed_dim = 64, 32
    seq_len = 8

    # Deterministic parameter init: nn.init.normal_(weight, mean=0.0, std=0.02)
    key = jax.random.PRNGKey(0)
    pos_weight = 0.02 * jax.random.normal(key, (max_len, embed_dim), dtype=jnp.float32)

    # 1) Single-descriptor path (typical small/medium prefix).
    out = learned_positional_embeddings(pos_weight, seq_len)
    out = jax.block_until_ready(out)
    ref = pos_weight[jnp.arange(seq_len)]
    assert out.shape == (seq_len, embed_dim), out.shape
    assert out.dtype == pos_weight.dtype
    assert bool(jnp.array_equal(out, ref)), "mismatch vs reference gather"

    # 2) Full-context fast path (no copy).
    out_full = jax.block_until_ready(learned_positional_embeddings(pos_weight, max_len))
    assert bool(jnp.array_equal(out_full, pos_weight))

    # 3) Exercise the multi-chunk / multi-program (grid) code path at tiny
    #    scale by temporarily lowering the byte thresholds (distinct seq_len
    #    forces a fresh trace that picks up the lowered thresholds).
    _saved = (_SPLIT_THRESHOLD_BYTES, _MIN_CHUNK_BYTES, _CROSS_CORE_SHARD_BYTES)
    _SPLIT_THRESHOLD_BYTES, _MIN_CHUNK_BYTES, _CROSS_CORE_SHARD_BYTES = 1024, 1024, 2048
    try:
        seq_len_big = 48
        out_big = jax.block_until_ready(
            learned_positional_embeddings(pos_weight, seq_len_big))
        assert bool(jnp.array_equal(out_big, pos_weight[:seq_len_big])), \
            "mismatch on multi-chunk path"
    finally:
        _SPLIT_THRESHOLD_BYTES, _MIN_CHUNK_BYTES, _CROSS_CORE_SHARD_BYTES = _saved

    print("KERNEL_OK")
</pallas_src>

<mosaic_0001>
module attributes {stable_mosaic.version = 11 : i64} {
  func.func @_copy_prefix_kernel(%arg0: memref<64x32xf32, #tpu.memory_space<any>>, %arg1: memref<8x32xf32, #tpu.memory_space<any>>, %arg2: memref<1x!tpu.dma_semaphore, #tpu.memory_space<semaphore_mem>>) attributes {dimension_semantics = [], scalar_prefetch = 0 : i64, scratch_operands = 1 : i64, tpu.core_type = #tpu.core_type<tc>} {
    %c0_i32 = arith.constant 0 : i32
    %c0_i32_0 = arith.constant 0 : i32
    %c0_i32_1 = arith.constant 0 : i32
    %0 = tpu.memref_slice %arg0[%c0_i32_0, %c0_i32_1] : memref<64x32xf32, #tpu.memory_space<any>> -> memref<8x32xf32, #tpu.memory_space<any>>
    %c0_i32_2 = arith.constant 0 : i32
    %c0_i32_3 = arith.constant 0 : i32
    %1 = tpu.memref_slice %arg1[%c0_i32_2, %c0_i32_3] : memref<8x32xf32, #tpu.memory_space<any>> -> memref<8x32xf32, #tpu.memory_space<any>>
    %2 = tpu.memref_slice %arg2[%c0_i32] : memref<1x!tpu.dma_semaphore, #tpu.memory_space<semaphore_mem>> -> memref<1x!tpu.dma_semaphore, #tpu.memory_space<semaphore_mem>>
    %3 = tpu.memref_squeeze %2 : memref<1x!tpu.dma_semaphore, #tpu.memory_space<semaphore_mem>> -> memref<!tpu.dma_semaphore, #tpu.memory_space<semaphore_mem>>
    tpu.enqueue_dma source(%0 : memref<8x32xf32, #tpu.memory_space<any>>) target(%1 : memref<8x32xf32, #tpu.memory_space<any>>) target_semaphore(%3 : memref<!tpu.dma_semaphore, #tpu.memory_space<semaphore_mem>>)
    %c0_i32_4 = arith.constant 0 : i32
    %c0_i32_5 = arith.constant 0 : i32
    %c0_i32_6 = arith.constant 0 : i32
    %4 = tpu.memref_slice %arg0[%c0_i32_5, %c0_i32_6] : memref<64x32xf32, #tpu.memory_space<any>> -> memref<8x32xf32, #tpu.memory_space<any>>
    %c0_i32_7 = arith.constant 0 : i32
    %c0_i32_8 = arith.constant 0 : i32
    %5 = tpu.memref_slice %arg1[%c0_i32_7, %c0_i32_8] : memref<8x32xf32, #tpu.memory_space<any>> -> memref<8x32xf32, #tpu.memory_space<any>>
    %6 = tpu.memref_slice %arg2[%c0_i32_4] : memref<1x!tpu.dma_semaphore, #tpu.memory_space<semaphore_mem>> -> memref<1x!tpu.dma_semaphore, #tpu.memory_space<semaphore_mem>>
    %7 = tpu.memref_squeeze %6 : memref<1x!tpu.dma_semaphore, #tpu.memory_space<semaphore_mem>> -> memref<!tpu.dma_semaphore, #tpu.memory_space<semaphore_mem>>
    tpu.wait_dma2 semaphore(%7 : memref<!tpu.dma_semaphore, #tpu.memory_space<semaphore_mem>>) src(%4 : memref<8x32xf32, #tpu.memory_space<any>>) dst(%5 : memref<8x32xf32, #tpu.memory_space<any>>)
    return
  }
}

</mosaic_0001>

<llo_original>
// kernel: learned_positional_embeddings.1
$region0: #{learned_positional_embeddings.1}
  #allocation0 [shape = 'u32[]', space=smem, size = 0x4, offset = 0x4, fixed_abs, tag = 'smem constant byte address 0x4 - core index']
  #allocation1 [shape = 'u32[144,128]{1,0:T(1,128)}', space=vmem, size = 0x12000, scoped, tag = 'internal scratch']
  #allocation2 [shape = 's32[1]{0}', space=sflag, size = 0x4, scoped, tag = 'scratch operand']
  #allocation3 [shape = 's32[]', space=sflag, size = 0x4, offset = 0, fixed_abs, tag = 'sflag constant byte address 0x0 - dummy sync flag']
  #allocation4 [shape = 's32[]', space=sflag, size = 0x4, offset = 0, fixed_abs, tag = 'sflag constant byte address 0x0 - dummy sync flag']
  #allocation5 [shape = 'u32[]', space=smem, size = 0x4, offset = 0x44, fixed_abs, tag = 'smem constant byte address 0x44 - assertion arg 0']
  #allocation6 [shape = 'u32[]', space=smem, size = 0x4, offset = 0x48, fixed_abs, tag = 'smem constant byte address 0x48 - assertion arg 1']
  %s0 = inlined_call_operand.vmem [shape: f32[64,32], index: 0, kind: input, shape index: {}]
  %s1 = inlined_call_operand.hbm [shape: f32[8,32], index: 1, kind: output, shape index: {}]
  %s2 = sld [smem:[#allocation0]]
  $region6: #{learned_positional_embeddings.1} parent=0
    _
  %s4 = ssub.s32 1, %s2
  %s5 = scalar_select 0, %s4, %s2
  // Predicated region
  $region2: #{learned_positional_embeddings.1} parent=0 // pred_check
    _
  $region3: #{learned_positional_embeddings.1} parent=0 // pred_check_branch
    %7 = sbr.rel target = $region5
  $region4: #{learned_positional_embeddings.1} parent=0 // pred_region
    %8 = sst [smem:[#allocation5]] [#allocation4]
    %9 = sst [smem:[#allocation6]] [#allocation3]
  $region5: #{learned_positional_embeddings.1} parent=0 // pred_fallthru
    _
  %11 = shalt.err (0)
  %s13 = sshll.u32 %s0, 4
  %s14 = int_to_ptr.vmem [resolvable:$true] %s13
  %16 = dma.vmem_to_hbm [thread:$0]  %s14, 128, %s1, [#allocation2]
  %s17 = smul.u32 8, 1
  %s18 = sshll.u32 %s17, 4
  %19 = dma.done [#allocation2], %s18
  %20 = vsyncmov [#allocation2]
  %s21 = vpop.sfrf %20
  %p22 = scmp.eq.s32.totalorder %s21, 0
  %p23 = pneg %p22
  %25 = shalt.err (%p23)

</llo_original>
